<compile_context>
chip_gen: v7x
topology: tpu7x:2x2x1
jax: 0.10.0
libtpu: 0.0.40
codegen_flags: <defaults>
</compile_context>

<pallas_src>
import functools

import jax
import jax.numpy as jnp
from jax.experimental import pallas as pl
from jax.experimental.pallas import tpu as pltpu


def _pre_emphasis_kernel(x_ref, halo_ref, o_ref, *, coef: float):
    """x_ref: (B, TILE) current tile.  halo_ref: (B, 128) strip containing the
    sample that precedes this tile (see halo index_map in the wrapper)."""
    x = x_ref[...]
    i = pl.program_id(0)

    # Sample preceding this tile's first column:
    #   tile 0   : reflect pad -> x[:, 1]                      == halo lane 1
    #   tile i>0 : last sample of previous tile x[:, i*tile-1] == halo lane 127
    boundary = jnp.where(i == 0, halo_ref[:, 1:2], halo_ref[:, 127:128])  # (B,1)

    # prev[:, t] = x[:, t-1]; the wrapped column 0 is spliced with `boundary`.
    shifted = pltpu.roll(x, shift=1, axis=1)                  # XLU lane rotate
    col = jax.lax.broadcasted_iota(jnp.int32, x.shape, 1)
    prev = jnp.where(col == 0, boundary, shifted)

    o_ref[...] = x - jnp.asarray(coef, x.dtype) * prev


def _round_up(n: int, m: int) -> int:
    return ((n + m - 1) // m) * m


def _choose_tile(B: int, T: int, target_block_bytes: int, min_steps: int) -> int:
    # Byte-budget tile width (multiple of 128 lanes, >= 128).
    tile = max(128, (target_block_bytes // (4 * B)) // 128 * 128)
    # Cap so the grid has >= min_steps when the signal is long enough
    # (pipelining + dual-TC sharding on v7x); never drop below 128 lanes.
    steps = min(min_steps, max(1, T // 128))
    tile = min(tile, _round_up(pl.cdiv(T, steps), 128))
    return tile


def pre_emphasis(
    x: jax.Array,
    coef: float = 0.97,
    *,
    target_block_bytes: int = 2 << 20,
    min_steps: int = 4,
    tile: int | None = None,
) -> jax.Array:
    """Pallas TPU implementation of PreEmphasis.forward.  x: (B, T) float32."""
    B, T = x.shape
    if T < 2:
        raise ValueError("PreEmphasis (reflect pad of 1) requires T >= 2")

    if tile is None:
        tile = _choose_tile(B, T, target_block_bytes, min_steps)
    assert tile % 128 == 0 and tile >= 128

    num_tiles = pl.cdiv(T, tile)          # partial last block is masked by Pallas
    halo_blocks_per_tile = tile // 128    # tile width in 128-lane halo blocks

    kernel = functools.partial(_pre_emphasis_kernel, coef=coef)

    return pl.pallas_call(
        kernel,
        out_shape=jax.ShapeDtypeStruct((B, T), x.dtype),
        grid=(num_tiles,),
        in_specs=[
            # Main streaming tile.
            pl.BlockSpec((B, tile), lambda i: (0, i)),
            # Halo: last 128-lane strip of the previous tile (clamped to block
            # 0 for tile 0, whose lane 1 is exactly the reflect sample).
            pl.BlockSpec(
                (B, 128),
                lambda i: (0, jnp.maximum(i * halo_blocks_per_tile - 1, 0)),
            ),
        ],
        out_specs=pl.BlockSpec((B, tile), lambda i: (0, i)),
        compiler_params=pltpu.CompilerParams(
            # Tiles are independent (halo, no carried state) -> shard across
            # both v7x TensorCores; harmless on single-TC v5e/v6e.
            dimension_semantics=("parallel",),
            # 2x(in) + 2x(out) 2 MiB blocks + halo + temps << 32 MiB on every
            # generation (v5e scoped default is only 16 MiB, so be explicit).
            vmem_limit_bytes=32 * 1024 * 1024,
        ),
    )(x, x)


def _reference(x: jax.Array, coef: float) -> jax.Array:
    """Pure-JAX mirror of F.pad(..., 'reflect') + conv1d([-coef, 1.0])."""
    prev = jnp.concatenate([x[:, 1:2], x[:, :-1]], axis=1)
    return x - coef * prev


if __name__ == "__main__":
    key = jax.random.PRNGKey(0)
    k1, k2, k3 = jax.random.split(key, 3)
    coef = 0.97

    # Case 1: ragged T, multi-tile (auto tile=256 -> grid=2). Exercises the
    # halo, the reflect boundary and the masked partial last block (no pad,
    # no output slice).
    x1 = jax.random.normal(k1, (4, 300), dtype=jnp.float32)
    y1 = jax.block_until_ready(pre_emphasis(x1, coef=coef))
    assert y1.shape == x1.shape and y1.dtype == jnp.float32
    assert jnp.allclose(y1, _reference(x1, coef), atol=1e-6, rtol=1e-6)

    # Case 2: exact single-tile path (T multiple of 128, grid=1).
    x2 = jax.random.normal(k2, (8, 128), dtype=jnp.float32)
    y2 = jax.block_until_ready(pre_emphasis(x2, coef=coef))
    assert y2.shape == x2.shape and y2.dtype == jnp.float32
    assert jnp.allclose(y2, _reference(x2, coef), atol=1e-6, rtol=1e-6)

    # Case 3: longer signal with a forced small tile -> many halo crossings.
    x3 = jax.random.normal(k3, (8, 1024), dtype=jnp.float32)
    y3 = jax.block_until_ready(pre_emphasis(x3, coef=coef, tile=128))
    assert y3.shape == x3.shape and y3.dtype == jnp.float32
    assert jnp.allclose(y3, _reference(x3, coef), atol=1e-6, rtol=1e-6)

    print("KERNEL_OK")
</pallas_src>

<mosaic_0001>
module attributes {stable_mosaic.version = 11 : i64} {
  func.func @_pre_emphasis_kernel(%arg0: i32, %arg1: memref<4x256xf32, #tpu.memory_space<vmem>>, %arg2: memref<4x128xf32, #tpu.memory_space<vmem>>, %arg3: memref<4x256xf32, #tpu.memory_space<vmem>>) attributes {dimension_semantics = [#tpu.dimension_semantics<parallel>], iteration_bounds = array<i64: 2>, scalar_prefetch = 0 : i64, scratch_operands = 0 : i64, tpu.core_type = #tpu.core_type<tc>, window_params = [{transform_indices = @transform_0, window_bounds = array<i64: 4, 256>}, {transform_indices = @transform_1, window_bounds = array<i64: 4, 128>}, {transform_indices = @transform_2, window_bounds = array<i64: 4, 256>}]} {
    %c0 = arith.constant 0 : index
    %c0_0 = arith.constant 0 : index
    %0 = vector.load %arg1[%c0, %c0_0] : memref<4x256xf32, #tpu.memory_space<vmem>>, vector<4x256xf32>
    %c0_i32 = arith.constant 0 : i32
    %1 = arith.cmpi eq, %arg0, %c0_i32 : i32
    %c0_1 = arith.constant 0 : index
    %c1 = arith.constant 1 : index
    %2 = vector.load %arg2[%c0_1, %c1] : memref<4x128xf32, #tpu.memory_space<vmem>>, vector<4x1xf32>
    %c0_2 = arith.constant 0 : index
    %c127 = arith.constant 127 : index
    %3 = vector.load %arg2[%c0_2, %c127] : memref<4x128xf32, #tpu.memory_space<vmem>>, vector<4x1xf32>
    %4 = arith.select %1, %2, %3 : vector<4x1xf32>
    %c1_i32 = arith.constant 1 : i32
    %5 = tpu.dynamic_rotate %0 by %c1_i32 dim 1 : vector<4x256xf32>, i32 -> vector<4x256xf32>
    %6 = tpu.iota {dimensions = array<i32: 1>} : vector<4x256xi32>
    %c0_i32_3 = arith.constant 0 : i32
    %7 = vector.broadcast %c0_i32_3 : i32 to vector<4x256xi32>
    %8 = arith.cmpi eq, %6, %7 : vector<4x256xi32>
    %9 = vector.shape_cast %4 : vector<4x1xf32> to vector<4x1xf32>
    %10 = vector.broadcast %9 : vector<4x1xf32> to vector<4x256xf32>
    %11 = arith.select %8, %10, %5 : vector<4x256xi1>, vector<4x256xf32>
    %cst = arith.constant 9.700000e-01 : f32
    %12 = vector.broadcast %cst : f32 to vector<4x256xf32>
    %13 = arith.mulf %12, %11 : vector<4x256xf32>
    %14 = arith.subf %0, %13 : vector<4x256xf32>
    %c0_4 = arith.constant 0 : index
    %c0_5 = arith.constant 0 : index
    %15 = vector.load %arg3[%c0_4, %c0_5] : memref<4x256xf32, #tpu.memory_space<vmem>>, vector<4x256xf32>
    tpu.vector_store %arg3[%c0_4, %c0_5], %14 {strides = array<i32>} : memref<4x256xf32, #tpu.memory_space<vmem>>, vector<4x256xf32>,
    return
  }
  func.func @transform_0(%arg0: i32) -> (i32, i32) {
    %c0_i32 = arith.constant 0 : i32
    %c0_i32_0 = arith.constant 0 : i32
    return %c0_i32, %arg0 : i32, i32
  }
  func.func @transform_1(%arg0: i32) -> (i32, i32) {
    %c2_i32 = arith.constant 2 : i32
    %0 = arith.muli %arg0, %c2_i32 : i32
    %c1_i32 = arith.constant 1 : i32
    %1 = arith.subi %0, %c1_i32 : i32
    %c0_i32 = arith.constant 0 : i32
    %2 = arith.maxsi %1, %c0_i32 : i32
    %c0_i32_0 = arith.constant 0 : i32
    %c0_i32_1 = arith.constant 0 : i32
    return %c0_i32_0, %2 : i32, i32
  }
  func.func @transform_2(%arg0: i32) -> (i32, i32) {
    %c0_i32 = arith.constant 0 : i32
    %c0_i32_0 = arith.constant 0 : i32
    return %c0_i32, %arg0 : i32, i32
  }
}

</mosaic_0001>

<llo_original>
// kernel: tpu_custom_call.1
$region0: #{tpu_custom_call.1}
  #allocation0 [shape = 'u32[]', space=smem, size = 0x4, offset = 0x4, fixed_abs, tag = 'smem constant byte address 0x4 - core index']
  #allocation1 [shape = 'u32[144,128]{1,0:T(1,128)}', space=vmem, size = 0x12000, scoped, tag = 'internal scratch']
  %s0 = inlined_call_operand.hbm [shape: f32[4,300], index: 0, kind: input, shape index: {}]
  %s1 = inlined_call_operand.hbm [shape: f32[4,300], index: 1, kind: input, shape index: {}]
  %s2 = inlined_call_operand.hbm [shape: f32[4,300], index: 2, kind: output, shape index: {}]
  %s3 = sld [smem:[#allocation0]]
  $region49: #{tpu_custom_call.1} parent=0
    _
  %s5 = ssub.s32 1, %s3
  %s6 = scalar_select 0, %s5, %s3
  $region1: #{tpu_custom_call.1} parent=0
    #allocation2 [shape = 'u8[8192]{0}', space=vmem, size = 0x2000, scoped, tag = 'input window, operand 0']
    #allocation3 [shape = 's32[2]{0}', space=sflag, size = 0x8, scoped, tag = 'scoped memory for tpu_custom_call.1']
    #allocation4 [shape = 's32[2]{0}', space=sflag, size = 0x8, scoped, tag = 'scoped memory for tpu_custom_call.1']
    #allocation5 [shape = 'u8[4096]{0}', space=vmem, size = 0x1000, scoped, tag = 'input window, operand 1']
    #allocation6 [shape = 's32[2]{0}', space=sflag, size = 0x8, scoped, tag = 'scoped memory for tpu_custom_call.1']
    #allocation7 [shape = 'u8[8192]{0}', space=vmem, size = 0x2000, scoped, tag = 'output window, operand 0']
    %7 = vsyncpa [#allocation3], 0
    %s8 = scalar_lea.sflag [#allocation3], 1
    %9 = vsyncpa %s8, 0
    %10 = vsyncpa [#allocation6], 0
    %s11 = scalar_lea.sflag [#allocation6], 1
    %12 = vsyncpa %s11, 0
    %13 = vsyncpa [#allocation4], 0
    %s14 = scalar_lea.sflag [#allocation4], 1
    %15 = vsyncpa %s14, 0
    loop: start=0, step=1, limit=4
    $region2: #{tpu_custom_call.1} parent=1 // loop_pre_header
      _
    $region3: #{tpu_custom_call.1} parent=1 // loop_header
      %s17 = sphi 0, %s21
      %p18 = scmp.ge.s32.totalorder %s17, 4
      %s27 = sphi 0, %s29
      %s30 = sphi 0, %s27
      %s31 = sphi 0, %s30
      %s47 = sphi 0, %s31
      %s61 = sphi 0, %s63
      %s64 = sphi 0, %s61
      %s65 = sphi 0, %s64
      %s81 = sphi 0, %s65
      %s87 = sphi 0, %s89
      %s90 = sphi 0, %s87
      %s91 = sphi 0, %s90
      %s107 = sphi 0, %s91
    $region4: #{tpu_custom_call.1} parent=1 // loop_header_branch
      %20 = sbr.rel (%p18) target = $region8
    $region5: #{tpu_custom_call.1} parent=1 // loop_body
      %s22 = ssub.s32 %s17, 1
      %s23 = ssub.s32 %s17, 2
      %s24 = sadd.s32 %s17, 1
      %s25 = ssub.s32 %s17, %s24
      %p26 = scmp.eq.s32.totalorder %s25, 0
      %s28 = sadd.s32 %s27, 1
      %s29 = scalar_select %p26, %s27, %s28
      %p32 = pneg %p26
      %p33 = scmp.eq.s32.totalorder %s17, 1
      %p34 = por %p32, %p33
      %p35 = scmp.ne.s32.totalorder %s27, %s30
      %p36 = scmp.eq.s32.totalorder %s17, 0
      %p37 = por %p35, %p36
      %p38 = scmp.ne.s32.totalorder %s27, %s30
      %p39 = scmp.eq.s32.totalorder %s22, 1
      %p40 = por %p38, %p39
      %p41 = scmp.ne.s32.totalorder %s30, %s31
      %p42 = scmp.eq.s32.totalorder %s22, 0
      %p43 = por %p41, %p42
      %p44 = scmp.ne.s32.totalorder %s30, %s31
      %p45 = scmp.eq.s32.totalorder %s23, 1
      %p46 = por %p44, %p45
      %p48 = scmp.ne.s32.totalorder %s31, %s47
      %p49 = scmp.eq.s32.totalorder %s23, 0
      %p50 = por %p48, %p49
      %s51 = smul.u32 %s17, 2
      %s52 = ssub.s32 %s51, 1
      %p53 = scmp.gt.s32.totalorder %s52, 0
      %s54 = scalar_select %p53, %s52, 0
      %s55 = smul.u32 %s24, 2
      %s56 = ssub.s32 %s55, 1
      %p57 = scmp.gt.s32.totalorder %s56, 0
      %s58 = scalar_select %p57, %s56, 0
      %s59 = ssub.s32 %s54, %s58
      %p60 = scmp.eq.s32.totalorder %s59, 0
      %s62 = sadd.s32 %s61, 1
      %s63 = scalar_select %p60, %s61, %s62
      %p66 = pneg %p60
      %p67 = scmp.eq.s32.totalorder %s17, 1
      %p68 = por %p66, %p67
      %p69 = scmp.ne.s32.totalorder %s61, %s64
      %p70 = scmp.eq.s32.totalorder %s17, 0
      %p71 = por %p69, %p70
      %p72 = scmp.ne.s32.totalorder %s61, %s64
      %p73 = scmp.eq.s32.totalorder %s22, 1
      %p74 = por %p72, %p73
      %p75 = scmp.ne.s32.totalorder %s64, %s65
      %p76 = scmp.eq.s32.totalorder %s22, 0
      %p77 = por %p75, %p76
      %p78 = scmp.ne.s32.totalorder %s64, %s65
      %p79 = scmp.eq.s32.totalorder %s23, 1
      %p80 = por %p78, %p79
      %p82 = scmp.ne.s32.totalorder %s65, %s81
      %p83 = scmp.eq.s32.totalorder %s23, 0
      %p84 = por %p82, %p83
      %s85 = ssub.s32 %s17, %s24
      %p86 = scmp.eq.s32.totalorder %s85, 0
      %s88 = sadd.s32 %s87, 1
      %s89 = scalar_select %p86, %s87, %s88
      %p92 = pneg %p86
      %p93 = scmp.eq.s32.totalorder %s17, 1
      %p94 = por %p92, %p93
      %p95 = scmp.ne.s32.totalorder %s87, %s90
      %p96 = scmp.eq.s32.totalorder %s17, 0
      %p97 = por %p95, %p96
      %p98 = scmp.ne.s32.totalorder %s87, %s90
      %p99 = scmp.eq.s32.totalorder %s22, 1
      %p100 = por %p98, %p99
      %p101 = scmp.ne.s32.totalorder %s90, %s91
      %p102 = scmp.eq.s32.totalorder %s22, 0
      %p103 = por %p101, %p102
      %p104 = scmp.ne.s32.totalorder %s90, %s91
      %p105 = scmp.eq.s32.totalorder %s23, 1
      %p106 = por %p104, %p105
      %p108 = scmp.ne.s32.totalorder %s91, %s107
      %p109 = scmp.eq.s32.totalorder %s23, 0
      %p110 = por %p108, %p109
      %p111 = scmp.le.s32.totalorder 1, %s17
      %p112 = scmp.lt.s32.totalorder %s17, 3
      %p113 = pnand %p111, %p112
      %p114 = pneg %p113
      // Predicated region
      $region9: #{tpu_custom_call.1} parent=5 // pred_check
        _
      $region10: #{tpu_custom_call.1} parent=5 // pred_check_branch
        %116 = sbr.rel (%p113) target = $region12
      $region11: #{tpu_custom_call.1} parent=5 // pred_region
        %s117 = ssub.s32 %s17, 1
      $region12: #{tpu_custom_call.1} parent=5 // pred_fallthru
        _
      %p118 = scmp.lt.s32.totalorder %s17, 2
      // Predicated region
      $region13: #{tpu_custom_call.1} parent=5 // pred_check
        %p119 = pneg %p118
      $region14: #{tpu_custom_call.1} parent=5 // pred_check_branch
        %121 = sbr.rel (%p119) target = $region16
      $region15: #{tpu_custom_call.1} parent=5 // pred_region
        // Predicated region
        $region17: #{tpu_custom_call.1} parent=15 // pred_check
          %p122 = pneg %p37
        $region18: #{tpu_custom_call.1} parent=15 // pred_check_branch
          %124 = sbr.rel (%p122) target = $region20
        $region19: #{tpu_custom_call.1} parent=15 // pred_region
          %s125 = sand.u32 %s27, 1
          %s126 = scalar_lea.sflag [#allocation3], %s125
          %s127 = sand.u32 %s27, 1
          %s128 = smul.addr %s127, 8
          %s129 = scalar_lea.vmem [#allocation2], %s128
          %s130 = smul.u32 2, %s17
          %s131 = ssub.s32 3, %s130
          %p132 = scmp.lt.s32.totalorder %s131, 2
          %s133 = scalar_select %p132, %s131, 2
          %s134 = smul.u32 64, %s133
          %s136 = ssub.s32 128, %s134
          %137 = vsyncadd %s126, %s136
          %p138 = scmp.ne.s32.totalorder 0, %s134
          %s139 = smul.addr %s130, 64
          %s140 = scalar_lea.hbm %s0, %s139
          %s141 = smul.u32 %s133, 4
          %s142 = sshll.u32 %s141, 4
          %s143 = sshll.u32 %s129, 4
          %s144 = int_to_ptr.vmem [resolvable:$true] %s143
          %146 = dma.hbm_to_vmem [thread:$0]  (%p138), %s140, %s142, %s144, %s126
        $region20: #{tpu_custom_call.1} parent=15 // pred_fallthru
          _
        // Predicated region
        $region21: #{tpu_custom_call.1} parent=15 // pred_check
          %p147 = pneg %p71
        $region22: #{tpu_custom_call.1} parent=15 // pred_check_branch
          %149 = sbr.rel (%p147) target = $region24
        $region23: #{tpu_custom_call.1} parent=15 // pred_region
          %s150 = sand.u32 %s61, 1
          %s151 = scalar_lea.sflag [#allocation6], %s150
          %s152 = sand.u32 %s61, 1
          %s153 = smul.addr %s152, 4
          %s154 = scalar_lea.vmem [#allocation5], %s153
          %s155 = smul.u32 %s17, 2
          %s156 = ssub.s32 %s155, 1
          %p157 = scmp.gt.s32.totalorder %s156, 0
          %s158 = scalar_select %p157, %s156, 0
          %s160 = ssub.s32 64, 64
          %161 = vsyncadd %s151, %s160
          %s162 = smul.addr %s158, 64
          %s163 = scalar_lea.hbm %s1, %s162
          %s165 = sshll.u32 %s154, 4
          %s166 = int_to_ptr.vmem [resolvable:$true] %s165
          %168 = dma.hbm_to_vmem [thread:$0]  %s163, 64, %s166, %s151
        $region24: #{tpu_custom_call.1} parent=15 // pred_fallthru
          _
      $region16: #{tpu_custom_call.1} parent=5 // pred_fallthru
        _
      %p169 = scmp.le.s32.totalorder 1, %s17
      %p170 = scmp.lt.s32.totalorder %s17, 3
      %p171 = pnand %p169, %p170
      %p172 = pneg %p171
      // Predicated region
      $region25: #{tpu_custom_call.1} parent=5 // pred_check
        _
      $region26: #{tpu_custom_call.1} parent=5 // pred_check_branch
        %174 = sbr.rel (%p171) target = $region28
      $region27: #{tpu_custom_call.1} parent=5 // pred_region
        %s175 = ssub.s32 %s17, 1
        %s176 = sand.u32 %s30, 1
        %s177 = scalar_lea.sflag [#allocation3], %s176
        %s178 = sand.u32 %s30, 1
        %s179 = smul.addr %s178, 8
        %s180 = scalar_lea.vmem [#allocation2], %s179
        // Predicated region
        $region29: #{tpu_custom_call.1} parent=27 // pred_check
          %p181 = pneg %p43
        $region30: #{tpu_custom_call.1} parent=27 // pred_check_branch
          %183 = sbr.rel (%p181) target = $region32
        $region31: #{tpu_custom_call.1} parent=27 // pred_region
          %184 = dma.done %s177, 128
        $region32: #{tpu_custom_call.1} parent=27 // pred_fallthru
          _
        %s185 = sand.u32 %s64, 1
        %s186 = scalar_lea.sflag [#allocation6], %s185
        %s187 = sand.u32 %s64, 1
        %s188 = smul.addr %s187, 4
        %s189 = scalar_lea.vmem [#allocation5], %s188
        // Predicated region
        $region33: #{tpu_custom_call.1} parent=27 // pred_check
          %p190 = pneg %p77
        $region34: #{tpu_custom_call.1} parent=27 // pred_check_branch
          %192 = sbr.rel (%p190) target = $region36
        $region35: #{tpu_custom_call.1} parent=27 // pred_region
          %193 = dma.done %s186, 64
        $region36: #{tpu_custom_call.1} parent=27 // pred_fallthru
          _
        %s194 = sand.u32 %s30, 1
        %s195 = scalar_lea.sflag [#allocation3], %s194
        %s196 = sand.u32 %s30, 1
        %s197 = smul.addr %s196, 8
        %s198 = scalar_lea.vmem [#allocation2], %s197
        %p199 = pneg %p43
        %p200 = pneg %p40
        %s201 = sand.u32 %s64, 1
        %s202 = scalar_lea.sflag [#allocation6], %s201
        %s203 = sand.u32 %s64, 1
        %s204 = smul.addr %s203, 4
        %s205 = scalar_lea.vmem [#allocation5], %s204
        %p206 = pneg %p77
        %p207 = pneg %p74
        %p208 = pneg %p103
        %p209 = pneg %p100
        %s210 = sand.u32 %s90, 1
        %s211 = scalar_lea.sflag [#allocation4], %s210
        %s212 = sand.u32 %s90, 1
        %s213 = smul.addr %s212, 8
        %s214 = scalar_lea.vmem [#allocation7], %s213
        %s215 = smul.u32 2, %s22
        %s216 = ssub.s32 3, %s215
        %p217 = scmp.lt.s32.totalorder %s216, 2
        %s218 = scalar_select %p217, %s216, 2
        %s219 = smul.u32 64, %s218
        %s220 = smul.u32 %s22, 2
        %s221 = ssub.s32 %s220, 1
        %p222 = scmp.gt.s32.totalorder %s221, 0
        %s223 = scalar_select %p222, %s221, 0
        %s224 = smul.u32 2, %s22
        %s225 = ssub.s32 3, %s224
        %p226 = scmp.lt.s32.totalorder %s225, 2
        %s227 = scalar_select %p226, %s225, 2
        %s228 = smul.u32 64, %s227
        %v229 = vld [vmem:[%s180] sm:$0xff]
        %p230 = scmp.eq.s32.totalorder %s22, 0
        %v231 = vld [vmem:[%s189] sm:$0xf]
        %s232 = scalar_select %p230, 1, 0
        %v233 = vstv %s232
        %vm234 = vcmp.eq.s32.totalorder %v233, 1
        %236 = vrot.lane.b32.xlu0 %v231, 2
        %v237 = vpop.permute.xlu0 %236
        %v239 = vsel %vm234, %v231, %v237
        %v241 = vcombine.high %v229, %v229
        %243 = vrot.lane.b32.xlu0 %v229, 1
        %v244 = vpop.permute.xlu0 %243
        %245 = vrot.lane.b32.xlu0 %v241, 1
        %v246 = vpop.permute.xlu0 %245
        %v247 = vlaneseq
        %v248 = vand.u32 %v247, 127
        %vm249 = vcmp.lt.s32.totalorder %v248, 1
        %v250 = vsel %vm249, %v244, %v246
        %v251 = vsel %vm249, %v246, %v244
        %v252 = vadd.s32 %v248, 128
        %vm253 = vcmp.eq.s32.totalorder %v248, 0
        %vm254 = vcmp.eq.s32.totalorder %v252, 0
        %256 = vset.pattern.permute.xlu0 1
        %257 = vperm.xlu0 %256, %v239
        %v258 = vpop.permute.xlu0 %257
        %v260 = vsel %vm253, %v258, %v251
        %v261 = vsel %vm254, %v258, %v250
        %v262 = vmul.f32 %v260, 0.97
        %v263 = vmul.f32 %v261, 0.97
        %v266 = vcombine.low %v262, %v263
        %v268 = vsub.f32 %v229, %v266
        %269 = vst [vmem:[%s214] sm:$0xff] %v268
        %s270 = sand.u32 %s90, 1
        %s271 = scalar_lea.sflag [#allocation4], %s270
        %s272 = sand.u32 %s90, 1
        %s273 = smul.addr %s272, 8
        %s274 = scalar_lea.vmem [#allocation7], %s273
        // Predicated region
        $region37: #{tpu_custom_call.1} parent=27 // pred_check
          %p275 = pneg %p100
        $region38: #{tpu_custom_call.1} parent=27 // pred_check_branch
          %277 = sbr.rel (%p275) target = $region40
        $region39: #{tpu_custom_call.1} parent=27 // pred_region
          %s278 = smul.u32 2, %s22
          %s279 = ssub.s32 3, %s278
          %p280 = scmp.lt.s32.totalorder %s279, 2
          %s281 = scalar_select %p280, %s279, 2
          %s282 = smul.u32 64, %s281
          %s284 = ssub.s32 128, %s282
          %285 = vsyncadd %s271, %s284
          %p286 = scmp.ne.s32.totalorder 0, %s282
          %s287 = smul.addr %s278, 64
          %s288 = scalar_lea.hbm %s2, %s287
          %s289 = smul.u32 %s281, 4
          %s290 = sshll.u32 %s289, 4
          %s291 = sshll.u32 %s274, 4
          %s292 = int_to_ptr.vmem [resolvable:$true] %s291
          %294 = dma.vmem_to_hbm [thread:$0]  (%p286), %s292, %s290, %s288, %s271
        $region40: #{tpu_custom_call.1} parent=27 // pred_fallthru
          _
      $region28: #{tpu_custom_call.1} parent=5 // pred_fallthru
        _
      %p295 = scmp.le.s32.totalorder 2, %s17
      // Predicated region
      $region41: #{tpu_custom_call.1} parent=5 // pred_check
        %p296 = pneg %p295
      $region42: #{tpu_custom_call.1} parent=5 // pred_check_branch
        %298 = sbr.rel (%p296) target = $region44
      $region43: #{tpu_custom_call.1} parent=5 // pred_region
        %s299 = ssub.s32 %s17, 2
        // Predicated region
        $region45: #{tpu_custom_call.1} parent=43 // pred_check
          %p300 = pneg %p106
        $region46: #{tpu_custom_call.1} parent=43 // pred_check_branch
          %302 = sbr.rel (%p300) target = $region48
        $region47: #{tpu_custom_call.1} parent=43 // pred_region
          %s303 = sand.u32 %s91, 1
          %s304 = scalar_lea.sflag [#allocation4], %s303
          %s305 = sand.u32 %s91, 1
          %s306 = smul.addr %s305, 8
          %s307 = scalar_lea.vmem [#allocation7], %s306
          %308 = dma.done %s304, 128
        $region48: #{tpu_custom_call.1} parent=43 // pred_fallthru
          _
      $region44: #{tpu_custom_call.1} parent=5 // pred_fallthru
        _
    $region6: #{tpu_custom_call.1} parent=1 // loop_footer
      %s21 = sadd.s32 1, %s17
    $region7: #{tpu_custom_call.1} parent=1 // loop_footer_branch
      %16 = sbr.rel target = $region3
    $region8: #{tpu_custom_call.1} parent=1 // loop_exit
      _
    %309 = vsyncpa [#allocation3], 1
    %s310 = scalar_lea.sflag [#allocation3], 1
    %311 = vsyncpa %s310, 1
    %312 = vsyncpa [#allocation6], 1
    %s313 = scalar_lea.sflag [#allocation6], 1
    %314 = vsyncpa %s313, 1
    %315 = vsyncpa [#allocation4], 1
    %s316 = scalar_lea.sflag [#allocation4], 1
    %317 = vsyncpa %s316, 1

</llo_original>
